<compile_context>
chip_gen: v5e
topology: v5e:2x2
jax: 0.10.0
libtpu: 0.0.40
codegen_flags: <defaults>
</compile_context>

<pallas_src>
import functools

import jax
import jax.numpy as jnp
from jax.experimental import pallas as pl
from jax.experimental.pallas import tpu as pltpu

N_EMOJIS = 4099
EMBED_DIM = 60
OUT_DIM = 512
IN_DIM = EMBED_DIM + 4   # 64  (embedding padded to 64 cols; pos in cols 60:64)
H1 = OUT_DIM // 8        # 64 (logical)
H1P = 128                # zero-padded to a full lane width
H2 = OUT_DIM // 2        # 256
BN_EPS = 1e-5

FAST_PATH_MAX_ROWS = 2048      # single fused kernel up to this many padded rows
MULTI_B_TILE = 1024            # target rows/tile for the big-batch 3-pass path
N_SHARDS = 2                   # leading "parallel" axis of the stats grids
VMEM_LIMIT = 32 * 1024 * 1024  # cross-generation safe (v7x has 64 MiB physical)


def _silu(h):
    # SiLU(x) = x * sigmoid(x); exp + approx reciprocal both run on the EUP
    # slot, keeping VALU slots free for the BN math.
    return h * pl.reciprocal(1.0 + jnp.exp(-h), approx=True)


def _resident(shape):
    # Parameter stays fully resident in VMEM across the whole grid.
    zeros = (0,) * len(shape)
    return pl.BlockSpec(shape, lambda *_: zeros)


# --------------------------------------------------------------------------
# Fast path: whole batch in one tile, everything fused into one kernel.
# --------------------------------------------------------------------------
def _fused_kernel(x_ref, w1_ref, b1_ref, g1_ref, be1_ref,
                  w2_ref, b2_ref, g2_ref, be2_ref, w3_ref, b3_ref,
                  o_ref, *, n_valid):
    n_rows = x_ref.shape[0]
    inv_n = jnp.float32(1.0 / n_valid)
    if n_rows != n_valid:
        row = jax.lax.broadcasted_iota(jnp.int32, (n_rows, 1), 0)
        valid = row < n_valid
    else:
        valid = None

    def bn_train_fold(a, g, be):
        # Training-mode BatchNorm1d (biased batch variance) folded to scale/shift.
        # NOTE: one-pass E[x^2]-E[x]^2 in f32; fine at these scales/tolerance.
        am = a if valid is None else jnp.where(valid, a, 0.0)
        s = jnp.sum(am, axis=0, keepdims=True)
        ss = jnp.sum(am * am, axis=0, keepdims=True)
        mu = s * inv_n
        var = jnp.maximum(ss * inv_n - mu * mu, 0.0)
        scale = g * jax.lax.rsqrt(var + BN_EPS)
        shift = be - mu * scale
        return a * scale + shift

    a1 = _silu(jnp.dot(x_ref[...], w1_ref[...],
                       preferred_element_type=jnp.float32) + b1_ref[...])
    h1 = bn_train_fold(a1, g1_ref[...], be1_ref[...]).astype(jnp.bfloat16)
    a2 = _silu(jnp.dot(h1, w2_ref[...],
                       preferred_element_type=jnp.float32) + b2_ref[...])
    h2 = bn_train_fold(a2, g2_ref[...], be2_ref[...]).astype(jnp.bfloat16)
    out = jnp.dot(h2, w3_ref[...], preferred_element_type=jnp.float32) + b3_ref[...]
    o_ref[...] = out.astype(o_ref.dtype)


# --------------------------------------------------------------------------
# Big-batch path: two stats passes (shard-parallel) + one parallel matmul.
# --------------------------------------------------------------------------
def _accum_stats(a, sum_ref, sumsq_ref, *, b_tile, n_valid, tiles_per_shard,
                 has_pad):
    """Accumulate per-(shard, sublane-phase) partial sum / sumsq of `a`."""

    def add(v):
        vr = v.reshape(v.shape[0] // 8, 8, v.shape[-1])
        sum_ref[...] += jnp.sum(vr, axis=0, keepdims=True)
        sumsq_ref[...] += jnp.sum(vr * vr, axis=0, keepdims=True)

    if not has_pad:
        add(a)
        return

    g = pl.program_id(0) * tiles_per_shard + pl.program_id(1)  # global batch tile
    first_pad_tile = n_valid // b_tile                         # python int
    needs_mask = g >= first_pad_tile

    @pl.when(needs_mask)
    def _():
        row = jax.lax.broadcasted_iota(jnp.int32, (a.shape[0], 1), 0)
        add(jnp.where(row < n_valid - g * b_tile, a, 0.0))

    @pl.when(jnp.logical_not(needs_mask))
    def _():
        add(a)


def _stats1_kernel(x_ref, w1_ref, b1_ref, sum_ref, sumsq_ref, *,
                   b_tile, n_valid, tiles_per_shard, has_pad):
    @pl.when(pl.program_id(1) == 0)
    def _():
        sum_ref[...] = jnp.zeros_like(sum_ref)
        sumsq_ref[...] = jnp.zeros_like(sumsq_ref)

    a1 = _silu(jnp.dot(x_ref[...], w1_ref[...],
                       preferred_element_type=jnp.float32) + b1_ref[...])
    _accum_stats(a1, sum_ref, sumsq_ref, b_tile=b_tile, n_valid=n_valid,
                 tiles_per_shard=tiles_per_shard, has_pad=has_pad)


def _stats2_kernel(x_ref, w1_ref, b1_ref, sc1_ref, sh1_ref, w2_ref, b2_ref,
                   a2_ref, sum_ref, sumsq_ref, *,
                   b_tile, n_valid, tiles_per_shard, has_pad):
    @pl.when(pl.program_id(1) == 0)
    def _():
        sum_ref[...] = jnp.zeros_like(sum_ref)
        sumsq_ref[...] = jnp.zeros_like(sumsq_ref)

    a1 = _silu(jnp.dot(x_ref[...], w1_ref[...],
                       preferred_element_type=jnp.float32) + b1_ref[...])
    h1 = (a1 * sc1_ref[...] + sh1_ref[...]).astype(jnp.bfloat16)
    a2 = _silu(jnp.dot(h1, w2_ref[...],
                       preferred_element_type=jnp.float32) + b2_ref[...])
    a2_ref[...] = a2.astype(jnp.bfloat16)     # cache activations for pass 3
    _accum_stats(a2, sum_ref, sumsq_ref, b_tile=b_tile, n_valid=n_valid,
                 tiles_per_shard=tiles_per_shard, has_pad=has_pad)


def _final_kernel(a2_ref, sc2_ref, sh2_ref, w3_ref, b3_ref, o_ref):
    h2 = (a2_ref[...].astype(jnp.float32) * sc2_ref[...]
          + sh2_ref[...]).astype(jnp.bfloat16)
    out = jnp.dot(h2, w3_ref[...], preferred_element_type=jnp.float32) + b3_ref[...]
    o_ref[...] = out.astype(o_ref.dtype)


def _fold_bn(part_sum, part_sumsq, gamma, beta, n):
    # Fold training-mode BN into per-feature scale/shift from the partial sums.
    # Divide by the VALID count n (not the padded count).
    # TODO(synk): PyTorch train() also updates running_mean/running_var; only
    # the normalization used by this forward pass is produced here.
    c = part_sum.shape[-1]
    s = jnp.sum(part_sum.reshape(-1, c), axis=0, keepdims=True)
    ss = jnp.sum(part_sumsq.reshape(-1, c), axis=0, keepdims=True)
    mu = s / n
    var = jnp.maximum(ss / n - mu * mu, 0.0)   # biased batch variance
    scale = gamma * jax.lax.rsqrt(var + BN_EPS)
    shift = beta - mu * scale
    return scale.astype(jnp.float32), shift.astype(jnp.float32)


def encoder_forward(emoji_idx, pos, params, *, out_dtype=jnp.float32,
                    fast_path_max_rows=FAST_PATH_MAX_ROWS):
    # Embedding gather on a 64-col zero-padded table; pos written into the
    # padding columns reproduces torch.cat([emb, pos], -1) with lane alignment.
    # TODO(synk): the gather itself could be fused in-kernel (scalar prefetch +
    # pl.Element row gather); it is a small fraction of the HBM traffic here.
    emb = jnp.take(params["embed"], emoji_idx, axis=0)               # [B, 64]
    x = jax.lax.dynamic_update_slice(emb, pos.astype(jnp.float32), (0, EMBED_DIM))
    x = x.astype(jnp.bfloat16)   # cast once; every kernel/pass reads bf16 x

    B = x.shape[0]
    w1, b1, g1, be1 = params["w1"], params["b1"], params["g1"], params["be1"]
    w2, b2, g2, be2 = params["w2"], params["b2"], params["g2"], params["be2"]
    w3, b3 = params["w3"], params["b3"]
    out_bytes = jnp.dtype(out_dtype).itemsize

    # ---------------- fast path: one fused kernel ----------------
    if B <= fast_path_max_rows:
        Bp = max(8, ((B + 7) // 8) * 8)
        if Bp != B:
            x = jnp.pad(x, ((0, Bp - B), (0, 0)))
        flops = 2 * Bp * (IN_DIM * H1P + H1P * H2 + H2 * OUT_DIM)
        bytes_accessed = int(Bp * (IN_DIM * 2 + OUT_DIM * out_bytes)
                             + (w1.size + w2.size + w3.size) * 2
                             + (b1.size + b2.size + b3.size
                                + g1.size + be1.size + g2.size + be2.size) * 4)
        out = pl.pallas_call(
            functools.partial(_fused_kernel, n_valid=B),
            out_shape=jax.ShapeDtypeStruct((Bp, OUT_DIM), out_dtype),
            grid=(1,),
            in_specs=[pl.BlockSpec((Bp, IN_DIM), lambda t: (0, 0)),
                      _resident(w1.shape), _resident(b1.shape),
                      _resident(g1.shape), _resident(be1.shape),
                      _resident(w2.shape), _resident(b2.shape),
                      _resident(g2.shape), _resident(be2.shape),
                      _resident(w3.shape), _resident(b3.shape)],
            out_specs=pl.BlockSpec((Bp, OUT_DIM), lambda t: (0, 0)),
            compiler_params=pltpu.CompilerParams(
                dimension_semantics=("arbitrary",), vmem_limit_bytes=VMEM_LIMIT),
            cost_estimate=pl.CostEstimate(flops=flops,
                                          transcendentals=Bp * (H1P + H2),
                                          bytes_accessed=bytes_accessed),
        )(x, w1, b1, g1, be1, w2, b2, g2, be2, w3, b3)
        return out[:B]

    # ---------------- big-batch path: 3 pallas_calls ----------------
    half = -(-B // N_SHARDS)
    tiles_per_shard = -(-half // MULTI_B_TILE)
    b_tile = ((-(-half // tiles_per_shard) + 15) // 16) * 16
    n_tiles = N_SHARDS * tiles_per_shard
    Bp = n_tiles * b_tile
    has_pad = Bp != B
    if has_pad:
        x = jnp.pad(x, ((0, Bp - B), (0, 0)))

    x_spec = pl.BlockSpec((b_tile, IN_DIM),
                          lambda c, t: (c * tiles_per_shard + t, 0))
    acc_spec = lambda C: pl.BlockSpec((1, 8, C), lambda c, t: (c, 0, 0))
    stats_cp = pltpu.CompilerParams(
        dimension_semantics=("parallel", "arbitrary"),
        vmem_limit_bytes=VMEM_LIMIT)
    stats_kw = dict(b_tile=b_tile, n_valid=B,
                    tiles_per_shard=tiles_per_shard, has_pad=has_pad)

    # pass 1: whole-batch stats of silu(x @ W1 + b1), sharded across cores
    sum1, sumsq1 = pl.pallas_call(
        functools.partial(_stats1_kernel, **stats_kw),
        out_shape=(jax.ShapeDtypeStruct((N_SHARDS, 8, H1P), jnp.float32),
                   jax.ShapeDtypeStruct((N_SHARDS, 8, H1P), jnp.float32)),
        grid=(N_SHARDS, tiles_per_shard),
        in_specs=[x_spec, _resident(w1.shape), _resident(b1.shape)],
        out_specs=(acc_spec(H1P), acc_spec(H1P)),
        compiler_params=stats_cp,
    )(x, w1, b1)
    sc1, sh1 = _fold_bn(sum1, sumsq1, g1, be1, B)

    # pass 2: layer-2 stats + cache a2 (bf16) so pass 3 needn't recompute
    a2, sum2, sumsq2 = pl.pallas_call(
        functools.partial(_stats2_kernel, **stats_kw),
        out_shape=(jax.ShapeDtypeStruct((Bp, H2), jnp.bfloat16),
                   jax.ShapeDtypeStruct((N_SHARDS, 8, H2), jnp.float32),
                   jax.ShapeDtypeStruct((N_SHARDS, 8, H2), jnp.float32)),
        grid=(N_SHARDS, tiles_per_shard),
        in_specs=[x_spec, _resident(w1.shape), _resident(b1.shape),
                  _resident(sc1.shape), _resident(sh1.shape),
                  _resident(w2.shape), _resident(b2.shape)],
        out_specs=(pl.BlockSpec((b_tile, H2),
                                lambda c, t: (c * tiles_per_shard + t, 0)),
                   acc_spec(H2), acc_spec(H2)),
        compiler_params=stats_cp,
    )(x, w1, b1, sc1, sh1, w2, b2)
    sc2, sh2 = _fold_bn(sum2, sumsq2, g2, be2, B)

    # pass 3: folded-BN2 + final 256x512 matmul, batch-parallel (megacore)
    flops = 2 * Bp * H2 * OUT_DIM
    bytes_accessed = int(Bp * (H2 * 2 + OUT_DIM * out_bytes)
                         + w3.size * 2
                         + (b3.size + sc2.size + sh2.size) * 4)
    out = pl.pallas_call(
        _final_kernel,
        out_shape=jax.ShapeDtypeStruct((Bp, OUT_DIM), out_dtype),
        grid=(n_tiles,),
        in_specs=[pl.BlockSpec((b_tile, H2), lambda t: (t, 0)),
                  _resident(sc2.shape), _resident(sh2.shape),
                  _resident(w3.shape), _resident(b3.shape)],
        out_specs=pl.BlockSpec((b_tile, OUT_DIM), lambda t: (t, 0)),
        compiler_params=pltpu.CompilerParams(
            dimension_semantics=("parallel",), vmem_limit_bytes=VMEM_LIMIT),
        cost_estimate=pl.CostEstimate(flops=flops, transcendentals=0,
                                      bytes_accessed=bytes_accessed),
    )(a2, sc2, sh2, w3, b3)
    return out[:B]


def init_params(key):
    """Kernel-ready synthetic parameters matching the PyTorch module.

    Linear weights are transposed to [in, out] and stored bf16 (MXU inputs);
    biases / BN params are f32.  H1 is zero-padded 64 -> 128 (exact padding).
    The embedding table is zero-padded 60 -> 64 columns.
    """
    ks = jax.random.split(key, 4)

    def linear(k, fan_in, fan_out):
        # PyTorch nn.Linear default init: U(-1/sqrt(fan_in), 1/sqrt(fan_in)).
        kw, kb = jax.random.split(k)
        bound = 1.0 / (fan_in ** 0.5)
        w = jax.random.uniform(kw, (fan_in, fan_out), jnp.float32, -bound, bound)
        b = jax.random.uniform(kb, (1, fan_out), jnp.float32, -bound, bound)
        return w, b

    embed = jax.random.normal(ks[0], (N_EMOJIS, EMBED_DIM), jnp.float32)
    embed = jnp.pad(embed, ((0, 0), (0, IN_DIM - EMBED_DIM)))        # [N, 64]

    w1, b1 = linear(ks[1], IN_DIM, H1)
    w2, b2 = linear(ks[2], H1, H2)
    w3, b3 = linear(ks[3], H2, OUT_DIM)

    # Zero-pad H1 64 -> 128 (w1 out cols, b1/g1/be1, w2 in rows): exact.
    w1 = jnp.pad(w1, ((0, 0), (0, H1P - H1)))
    b1 = jnp.pad(b1, ((0, 0), (0, H1P - H1)))
    w2 = jnp.pad(w2, ((0, H1P - H1), (0, 0)))
    g1 = jnp.pad(jnp.ones((1, H1), jnp.float32), ((0, 0), (0, H1P - H1)))
    be1 = jnp.zeros((1, H1P), jnp.float32)
    g2 = jnp.ones((1, H2), jnp.float32)
    be2 = jnp.zeros((1, H2), jnp.float32)

    return dict(embed=embed,
                w1=w1.astype(jnp.bfloat16), b1=b1, g1=g1, be1=be1,
                w2=w2.astype(jnp.bfloat16), b2=b2, g2=g2, be2=be2,
                w3=w3.astype(jnp.bfloat16), b3=b3)


def _reference(emoji_idx, pos, p):
    # Plain-JAX f32 reference of the same forward (same bf16-stored weights).
    emb = jnp.take(p["embed"][:, :EMBED_DIM], emoji_idx, axis=0)
    x = jnp.concatenate([emb, pos.astype(jnp.float32)], axis=-1)

    def block(h, w, b, g, be):
        h = jnp.dot(h, w.astype(jnp.float32)) + b
        h = h * jax.nn.sigmoid(h)
        mu = jnp.mean(h, axis=0, keepdims=True)
        var = jnp.mean((h - mu) ** 2, axis=0, keepdims=True)
        return (h - mu) * jax.lax.rsqrt(var + BN_EPS) * g + be

    h = block(x, p["w1"], p["b1"], p["g1"], p["be1"])
    h = block(h, p["w2"], p["b2"], p["g2"], p["be2"])
    return jnp.dot(h, p["w3"].astype(jnp.float32)) + p["b3"]


if __name__ == "__main__":
    key = jax.random.PRNGKey(0)
    kp, ki, kpos = jax.random.split(key, 3)
    params = init_params(kp)

    def run_case(B, fast_path_max_rows=FAST_PATH_MAX_ROWS):
        kib = jax.random.fold_in(ki, B)
        kpb = jax.random.fold_in(kpos, B)
        emoji_idx = jax.random.randint(kib, (B,), 0, N_EMOJIS, dtype=jnp.int32)
        pos = jax.random.normal(kpb, (B, 4), dtype=jnp.float32)
        out = jax.block_until_ready(
            encoder_forward(emoji_idx, pos, params,
                            fast_path_max_rows=fast_path_max_rows))
        assert out.shape == (B, OUT_DIM), out.shape
        assert out.dtype == jnp.float32
        assert bool(jnp.all(jnp.isfinite(out)))
        ref = _reference(emoji_idx, pos, params)
        max_err = float(jnp.max(jnp.abs(out - ref)))
        assert max_err < 0.2, f"B={B}: max abs error {max_err} vs f32 reference"

    run_case(8)                               # fused fast path, no padding
    run_case(5)                               # fused fast path with padded rows
    run_case(300, fast_path_max_rows=64)      # big-batch 3-pass path (+ padding)
    print("KERNEL_OK")
</pallas_src>

<mosaic_0001>
module attributes {stable_mosaic.version = 11 : i64} {
  func.func @_fused_kernel(%arg0: i32, %arg1: memref<8x64xbf16, #tpu.memory_space<vmem>>, %arg2: memref<64x128xbf16, #tpu.memory_space<vmem>>, %arg3: memref<1x128xf32, #tpu.memory_space<vmem>>, %arg4: memref<1x128xf32, #tpu.memory_space<vmem>>, %arg5: memref<1x128xf32, #tpu.memory_space<vmem>>, %arg6: memref<128x256xbf16, #tpu.memory_space<vmem>>, %arg7: memref<1x256xf32, #tpu.memory_space<vmem>>, %arg8: memref<1x256xf32, #tpu.memory_space<vmem>>, %arg9: memref<1x256xf32, #tpu.memory_space<vmem>>, %arg10: memref<256x512xbf16, #tpu.memory_space<vmem>>, %arg11: memref<1x512xf32, #tpu.memory_space<vmem>>, %arg12: memref<8x512xf32, #tpu.memory_space<vmem>>) attributes {dimension_semantics = [#tpu.dimension_semantics<arbitrary>], iteration_bounds = array<i64: 1>, scalar_prefetch = 0 : i64, scratch_operands = 0 : i64, tpu.core_type = #tpu.core_type<tc>, window_params = [{pipeline_mode = #tpu.pipeline_mode<synchronous>, transform_indices = @transform_0, window_bounds = array<i64: 8, 64>}, {pipeline_mode = #tpu.pipeline_mode<synchronous>, transform_indices = @transform_1, window_bounds = array<i64: 64, 128>}, {pipeline_mode = #tpu.pipeline_mode<synchronous>, transform_indices = @transform_2, window_bounds = array<i64: 1, 128>}, {pipeline_mode = #tpu.pipeline_mode<synchronous>, transform_indices = @transform_3, window_bounds = array<i64: 1, 128>}, {pipeline_mode = #tpu.pipeline_mode<synchronous>, transform_indices = @transform_4, window_bounds = array<i64: 1, 128>}, {pipeline_mode = #tpu.pipeline_mode<synchronous>, transform_indices = @transform_5, window_bounds = array<i64: 128, 256>}, {pipeline_mode = #tpu.pipeline_mode<synchronous>, transform_indices = @transform_6, window_bounds = array<i64: 1, 256>}, {pipeline_mode = #tpu.pipeline_mode<synchronous>, transform_indices = @transform_7, window_bounds = array<i64: 1, 256>}, {pipeline_mode = #tpu.pipeline_mode<synchronous>, transform_indices = @transform_8, window_bounds = array<i64: 1, 256>}, {pipeline_mode = #tpu.pipeline_mode<synchronous>, transform_indices = @transform_9, window_bounds = array<i64: 256, 512>}, {pipeline_mode = #tpu.pipeline_mode<synchronous>, transform_indices = @transform_10, window_bounds = array<i64: 1, 512>}, {pipeline_mode = #tpu.pipeline_mode<synchronous>, transform_indices = @transform_11, window_bounds = array<i64: 8, 512>}]} {
    %c0 = arith.constant 0 : index
    %c0_0 = arith.constant 0 : index
    %0 = vector.load %arg1[%c0, %c0_0] : memref<8x64xbf16, #tpu.memory_space<vmem>>, vector<8x64xbf16>
    %c0_1 = arith.constant 0 : index
    %c0_2 = arith.constant 0 : index
    %1 = vector.load %arg2[%c0_1, %c0_2] : memref<64x128xbf16, #tpu.memory_space<vmem>>, vector<64x128xbf16>
    %cst = arith.constant dense<0.000000e+00> : vector<8x128xf32>
    %2 = tpu.matmul %0, %1, %cst {dimension_numbers = #tpu.dot_dimension_numbers<[1], [0], [0], [1], [0, 0, 1, 1], [], []>} : vector<8x64xbf16>, vector<64x128xbf16>, vector<8x128xf32> -> vector<8x128xf32>
    %c0_3 = arith.constant 0 : index
    %c0_4 = arith.constant 0 : index
    %3 = vector.load %arg3[%c0_3, %c0_4] : memref<1x128xf32, #tpu.memory_space<vmem>>, vector<1x128xf32>
    %4 = vector.broadcast %3 : vector<1x128xf32> to vector<8x128xf32>
    %5 = arith.addf %2, %4 : vector<8x128xf32>
    %cst_5 = arith.constant 0.000000e+00 : f32
    %6 = vector.broadcast %cst_5 : f32 to vector<8x128xf32>
    %7 = arith.subf %6, %5 : vector<8x128xf32>
    %8 = math.exp %7 : vector<8x128xf32>
    %cst_6 = arith.constant 1.000000e+00 : f32
    %9 = vector.broadcast %cst_6 : f32 to vector<8x128xf32>
    %10 = arith.addf %9, %8 : vector<8x128xf32>
    %11 = tpu.reciprocal %10 {approx = true} : vector<8x128xf32> -> vector<8x128xf32>
    %12 = arith.mulf %5, %11 : vector<8x128xf32>
    %c0_7 = arith.constant 0 : index
    %c0_8 = arith.constant 0 : index
    %13 = vector.load %arg4[%c0_7, %c0_8] : memref<1x128xf32, #tpu.memory_space<vmem>>, vector<1x128xf32>
    %c0_9 = arith.constant 0 : index
    %c0_10 = arith.constant 0 : index
    %14 = vector.load %arg5[%c0_9, %c0_10] : memref<1x128xf32, #tpu.memory_space<vmem>>, vector<1x128xf32>
    %cst_11 = arith.constant dense<0.000000e+00> : vector<128xf32>
    %15 = vector.multi_reduction <add>, %12, %cst_11 [0] : vector<8x128xf32> to vector<128xf32>
    %16 = vector.shape_cast %15 : vector<128xf32> to vector<1x128xf32>
    %17 = arith.mulf %12, %12 : vector<8x128xf32>
    %cst_12 = arith.constant dense<0.000000e+00> : vector<128xf32>
    %18 = vector.multi_reduction <add>, %17, %cst_12 [0] : vector<8x128xf32> to vector<128xf32>
    %19 = vector.shape_cast %18 : vector<128xf32> to vector<1x128xf32>
    %cst_13 = arith.constant 1.250000e-01 : f32
    %20 = vector.broadcast %cst_13 : f32 to vector<1x128xf32>
    %21 = arith.mulf %16, %20 : vector<1x128xf32>
    %cst_14 = arith.constant 1.250000e-01 : f32
    %22 = vector.broadcast %cst_14 : f32 to vector<1x128xf32>
    %23 = arith.mulf %19, %22 : vector<1x128xf32>
    %24 = arith.mulf %21, %21 : vector<1x128xf32>
    %25 = arith.subf %23, %24 : vector<1x128xf32>
    %cst_15 = arith.constant 0.000000e+00 : f32
    %26 = vector.broadcast %cst_15 : f32 to vector<1x128xf32>
    %27 = arith.maximumf %25, %26 : vector<1x128xf32>
    %cst_16 = arith.constant 9.99999974E-6 : f32
    %28 = vector.broadcast %cst_16 : f32 to vector<1x128xf32>
    %29 = arith.addf %27, %28 : vector<1x128xf32>
    %30 = math.rsqrt %29 : vector<1x128xf32>
    %31 = arith.mulf %13, %30 : vector<1x128xf32>
    %32 = arith.mulf %21, %31 : vector<1x128xf32>
    %33 = arith.subf %14, %32 : vector<1x128xf32>
    %34 = vector.broadcast %31 : vector<1x128xf32> to vector<8x128xf32>
    %35 = arith.mulf %12, %34 : vector<8x128xf32>
    %36 = vector.broadcast %33 : vector<1x128xf32> to vector<8x128xf32>
    %37 = arith.addf %35, %36 : vector<8x128xf32>
    %38 = arith.truncf %37 : vector<8x128xf32> to vector<8x128xbf16>
    %c0_17 = arith.constant 0 : index
    %c0_18 = arith.constant 0 : index
    %39 = vector.load %arg6[%c0_17, %c0_18] : memref<128x256xbf16, #tpu.memory_space<vmem>>, vector<128x256xbf16>
    %cst_19 = arith.constant dense<0.000000e+00> : vector<8x256xf32>
    %40 = tpu.matmul %38, %39, %cst_19 {dimension_numbers = #tpu.dot_dimension_numbers<[1], [0], [0], [1], [0, 0, 1, 1], [], []>} : vector<8x128xbf16>, vector<128x256xbf16>, vector<8x256xf32> -> vector<8x256xf32>
    %c0_20 = arith.constant 0 : index
    %c0_21 = arith.constant 0 : index
    %41 = vector.load %arg7[%c0_20, %c0_21] : memref<1x256xf32, #tpu.memory_space<vmem>>, vector<1x256xf32>
    %42 = vector.broadcast %41 : vector<1x256xf32> to vector<8x256xf32>
    %43 = arith.addf %40, %42 : vector<8x256xf32>
    %cst_22 = arith.constant 0.000000e+00 : f32
    %44 = vector.broadcast %cst_22 : f32 to vector<8x256xf32>
    %45 = arith.subf %44, %43 : vector<8x256xf32>
    %46 = math.exp %45 : vector<8x256xf32>
    %cst_23 = arith.constant 1.000000e+00 : f32
    %47 = vector.broadcast %cst_23 : f32 to vector<8x256xf32>
    %48 = arith.addf %47, %46 : vector<8x256xf32>
    %49 = tpu.reciprocal %48 {approx = true} : vector<8x256xf32> -> vector<8x256xf32>
    %50 = arith.mulf %43, %49 : vector<8x256xf32>
    %c0_24 = arith.constant 0 : index
    %c0_25 = arith.constant 0 : index
    %51 = vector.load %arg8[%c0_24, %c0_25] : memref<1x256xf32, #tpu.memory_space<vmem>>, vector<1x256xf32>
    %c0_26 = arith.constant 0 : index
    %c0_27 = arith.constant 0 : index
    %52 = vector.load %arg9[%c0_26, %c0_27] : memref<1x256xf32, #tpu.memory_space<vmem>>, vector<1x256xf32>
    %cst_28 = arith.constant dense<0.000000e+00> : vector<256xf32>
    %53 = vector.multi_reduction <add>, %50, %cst_28 [0] : vector<8x256xf32> to vector<256xf32>
    %54 = vector.shape_cast %53 : vector<256xf32> to vector<1x256xf32>
    %55 = arith.mulf %50, %50 : vector<8x256xf32>
    %cst_29 = arith.constant dense<0.000000e+00> : vector<256xf32>
    %56 = vector.multi_reduction <add>, %55, %cst_29 [0] : vector<8x256xf32> to vector<256xf32>
    %57 = vector.shape_cast %56 : vector<256xf32> to vector<1x256xf32>
    %cst_30 = arith.constant 1.250000e-01 : f32
    %58 = vector.broadcast %cst_30 : f32 to vector<1x256xf32>
    %59 = arith.mulf %54, %58 : vector<1x256xf32>
    %cst_31 = arith.constant 1.250000e-01 : f32
    %60 = vector.broadcast %cst_31 : f32 to vector<1x256xf32>
    %61 = arith.mulf %57, %60 : vector<1x256xf32>
    %62 = arith.mulf %59, %59 : vector<1x256xf32>
    %63 = arith.subf %61, %62 : vector<1x256xf32>
    %cst_32 = arith.constant 0.000000e+00 : f32
    %64 = vector.broadcast %cst_32 : f32 to vector<1x256xf32>
    %65 = arith.maximumf %63, %64 : vector<1x256xf32>
    %cst_33 = arith.constant 9.99999974E-6 : f32
    %66 = vector.broadcast %cst_33 : f32 to vector<1x256xf32>
    %67 = arith.addf %65, %66 : vector<1x256xf32>
    %68 = math.rsqrt %67 : vector<1x256xf32>
    %69 = arith.mulf %51, %68 : vector<1x256xf32>
    %70 = arith.mulf %59, %69 : vector<1x256xf32>
    %71 = arith.subf %52, %70 : vector<1x256xf32>
    %72 = vector.broadcast %69 : vector<1x256xf32> to vector<8x256xf32>
    %73 = arith.mulf %50, %72 : vector<8x256xf32>
    %74 = vector.broadcast %71 : vector<1x256xf32> to vector<8x256xf32>
    %75 = arith.addf %73, %74 : vector<8x256xf32>
    %76 = arith.truncf %75 : vector<8x256xf32> to vector<8x256xbf16>
    %c0_34 = arith.constant 0 : index
    %c0_35 = arith.constant 0 : index
    %77 = vector.load %arg10[%c0_34, %c0_35] : memref<256x512xbf16, #tpu.memory_space<vmem>>, vector<256x512xbf16>
    %cst_36 = arith.constant dense<0.000000e+00> : vector<8x512xf32>
    %78 = tpu.matmul %76, %77, %cst_36 {dimension_numbers = #tpu.dot_dimension_numbers<[1], [0], [0], [1], [0, 0, 1, 1], [], []>} : vector<8x256xbf16>, vector<256x512xbf16>, vector<8x512xf32> -> vector<8x512xf32>
    %c0_37 = arith.constant 0 : index
    %c0_38 = arith.constant 0 : index
    %79 = vector.load %arg11[%c0_37, %c0_38] : memref<1x512xf32, #tpu.memory_space<vmem>>, vector<1x512xf32>
    %80 = vector.broadcast %79 : vector<1x512xf32> to vector<8x512xf32>
    %81 = arith.addf %78, %80 : vector<8x512xf32>
    %c0_39 = arith.constant 0 : index
    %c0_40 = arith.constant 0 : index
    %82 = vector.load %arg12[%c0_39, %c0_40] : memref<8x512xf32, #tpu.memory_space<vmem>>, vector<8x512xf32>
    tpu.vector_store %arg12[%c0_39, %c0_40], %81 {strides = array<i32>} : memref<8x512xf32, #tpu.memory_space<vmem>>, vector<8x512xf32>,
    return
  }
  func.func @transform_0(%arg0: i32) -> (i32, i32) {
    %c0_i32 = arith.constant 0 : i32
    %c0_i32_0 = arith.constant 0 : i32
    %c0_i32_1 = arith.constant 0 : i32
    return %c0_i32, %c0_i32_0 : i32, i32
  }
  func.func @transform_1(%arg0: i32) -> (i32, i32) {
    %c0_i32 = arith.constant 0 : i32
    %c0_i32_0 = arith.constant 0 : i32
    %c0_i32_1 = arith.constant 0 : i32
    return %c0_i32, %c0_i32_0 : i32, i32
  }
  func.func @transform_2(%arg0: i32) -> (i32, i32) {
    %c0_i32 = arith.constant 0 : i32
    %c0_i32_0 = arith.constant 0 : i32
    %c0_i32_1 = arith.constant 0 : i32
    return %c0_i32, %c0_i32_0 : i32, i32
  }
  func.func @transform_3(%arg0: i32) -> (i32, i32) {
    %c0_i32 = arith.constant 0 : i32
    %c0_i32_0 = arith.constant 0 : i32
    %c0_i32_1 = arith.constant 0 : i32
    return %c0_i32, %c0_i32_0 : i32, i32
  }
  func.func @transform_4(%arg0: i32) -> (i32, i32) {
    %c0_i32 = arith.constant 0 : i32
    %c0_i32_0 = arith.constant 0 : i32
    %c0_i32_1 = arith.constant 0 : i32
    return %c0_i32, %c0_i32_0 : i32, i32
  }
  func.func @transform_5(%arg0: i32) -> (i32, i32) {
    %c0_i32 = arith.constant 0 : i32
    %c0_i32_0 = arith.constant 0 : i32
    %c0_i32_1 = arith.constant 0 : i32
    return %c0_i32, %c0_i32_0 : i32, i32
  }
  func.func @transform_6(%arg0: i32) -> (i32, i32) {
    %c0_i32 = arith.constant 0 : i32
    %c0_i32_0 = arith.constant 0 : i32
    %c0_i32_1 = arith.constant 0 : i32
    return %c0_i32, %c0_i32_0 : i32, i32
  }
  func.func @transform_7(%arg0: i32) -> (i32, i32) {
    %c0_i32 = arith.constant 0 : i32
    %c0_i32_0 = arith.constant 0 : i32
    %c0_i32_1 = arith.constant 0 : i32
    return %c0_i32, %c0_i32_0 : i32, i32
  }
  func.func @transform_8(%arg0: i32) -> (i32, i32) {
    %c0_i32 = arith.constant 0 : i32
    %c0_i32_0 = arith.constant 0 : i32
    %c0_i32_1 = arith.constant 0 : i32
    return %c0_i32, %c0_i32_0 : i32, i32
  }
  func.func @transform_9(%arg0: i32) -> (i32, i32) {
    %c0_i32 = arith.constant 0 : i32
    %c0_i32_0 = arith.constant 0 : i32
    %c0_i32_1 = arith.constant 0 : i32
    return %c0_i32, %c0_i32_0 : i32, i32
  }
  func.func @transform_10(%arg0: i32) -> (i32, i32) {
    %c0_i32 = arith.constant 0 : i32
    %c0_i32_0 = arith.constant 0 : i32
    %c0_i32_1 = arith.constant 0 : i32
    return %c0_i32, %c0_i32_0 : i32, i32
  }
  func.func @transform_11(%arg0: i32) -> (i32, i32) {
    %c0_i32 = arith.constant 0 : i32
    %c0_i32_0 = arith.constant 0 : i32
    %c0_i32_1 = arith.constant 0 : i32
    return %c0_i32, %c0_i32_0 : i32, i32
  }
}

</mosaic_0001>

<llo_original>
// kernel: tpu_custom_call.1
$region0: #{tpu_custom_call.1}
  #allocation0 [shape = 'u32[]', space=smem, size = 0x4, offset = 0x4, fixed_abs, tag = 'smem constant byte address 0x4 - core index']
  #allocation1 [shape = 'u32[72,128]{1,0:T(1,128)}', space=vmem, size = 0x9000, scoped, tag = 'internal scratch']
  %s0 = inlined_call_operand.hbm [shape: bf16[8,64], index: 0, kind: input, shape index: {}]
  %s1 = inlined_call_operand.hbm [shape: bf16[64,128], index: 1, kind: input, shape index: {}]
  %s2 = inlined_call_operand.vmem [shape: f32[1,128], index: 2, kind: input, shape index: {}]
  %s3 = inlined_call_operand.hbm [shape: f32[1,128], index: 3, kind: input, shape index: {}]
  %s4 = inlined_call_operand.hbm [shape: f32[1,128], index: 4, kind: input, shape index: {}]
  %s5 = inlined_call_operand.hbm [shape: bf16[128,256], index: 5, kind: input, shape index: {}]
  %s6 = inlined_call_operand.vmem [shape: f32[1,256], index: 6, kind: input, shape index: {}]
  %s7 = inlined_call_operand.hbm [shape: f32[1,256], index: 7, kind: input, shape index: {}]
  %s8 = inlined_call_operand.hbm [shape: f32[1,256], index: 8, kind: input, shape index: {}]
  %s9 = inlined_call_operand.hbm [shape: bf16[256,512], index: 9, kind: input, shape index: {}]
  %s10 = inlined_call_operand.vmem [shape: f32[1,512], index: 10, kind: input, shape index: {}]
  %s11 = inlined_call_operand.hbm [shape: f32[8,512], index: 11, kind: output, shape index: {}]
  %s12 = sld [smem:[#allocation0]]
  $region86: #{tpu_custom_call.1} parent=0
    _
  %s14 = ssub.s32 1, %s12
  %s15 = scalar_select 0, %s14, %s12
  $region1: #{tpu_custom_call.1} parent=0
    #allocation2 [shape = 'u8[2048]{0}', space=vmem, size = 0x800, scoped, tag = 'input window, operand 0, single buffered']
    #allocation3 [shape = 's32[1]{0}', space=sflag, size = 0x4, scoped, tag = 'scoped memory for tpu_custom_call.1']
    #allocation4 [shape = 's32[1]{0}', space=sflag, size = 0x4, scoped, tag = 'scoped memory for tpu_custom_call.1']
    #allocation5 [shape = 'u8[16384]{0}', space=vmem, size = 0x4000, scoped, tag = 'input window, operand 1, single buffered']
    #allocation6 [shape = 's32[1]{0}', space=sflag, size = 0x4, scoped, tag = 'scoped memory for tpu_custom_call.1']
    #allocation7 [shape = 'u8[512]{0}', space=vmem, size = 0x400, scoped, tag = 'input window, operand 3, single buffered']
    #allocation8 [shape = 'u8[512]{0}', space=vmem, size = 0x400, scoped, tag = 'input window, operand 4, single buffered']
    #allocation9 [shape = 's32[1]{0}', space=sflag, size = 0x4, scoped, tag = 'scoped memory for tpu_custom_call.1']
    #allocation10 [shape = 'u8[65536]{0}', space=vmem, size = 0x10000, scoped, tag = 'input window, operand 5, single buffered']
    #allocation11 [shape = 'u8[1024]{0}', space=vmem, size = 0x400, scoped, tag = 'input window, operand 7, single buffered']
    #allocation12 [shape = 's32[1]{0}', space=sflag, size = 0x4, scoped, tag = 'scoped memory for tpu_custom_call.1']
    #allocation13 [shape = 'u8[1024]{0}', space=vmem, size = 0x400, scoped, tag = 'input window, operand 8, single buffered']
    #allocation14 [shape = 'u8[262144]{0}', space=vmem, size = 0x40000, scoped, tag = 'input window, operand 9, single buffered']
    #allocation15 [shape = 's32[1]{0}', space=sflag, size = 0x4, scoped, tag = 'scoped memory for tpu_custom_call.1']
    #allocation16 [shape = 'u8[16384]{0}', space=vmem, size = 0x4000, scoped, tag = 'output window, operand 0, single buffered']
    %16 = vsyncpa [#allocation3], 0
    %17 = vsyncpa [#allocation6], 0
    %18 = vsyncpa [#allocation9], 0
    %19 = vsyncpa [#allocation12], 0
    %20 = vsyncpa [#allocation15], 0
    %21 = vsyncpa [#allocation4], 0
    // Predicated region
    $region2: #{tpu_custom_call.1} parent=1 // pred_check
      _
    $region3: #{tpu_custom_call.1} parent=1 // pred_check_branch
      %23 = sbr.rel (0) target = $region5
    $region4: #{tpu_custom_call.1} parent=1 // pred_region
      %25 = vsyncadd [#allocation3], 0
      %s27 = sshll.u32 %s0, 4
      %s28 = int_to_ptr.hbm [resolvable:$true] %s27
      %s29 = sshll.u32 [#allocation2], 4
      %s30 = int_to_ptr.vmem [resolvable:$true] %s29
      %32 = dma.hbm_to_vmem [thread:$0]  %s28, 64, %s30, [#allocation3]
    $region5: #{tpu_custom_call.1} parent=1 // pred_fallthru
      _
    // Predicated region
    $region6: #{tpu_custom_call.1} parent=1 // pred_check
      _
    $region7: #{tpu_custom_call.1} parent=1 // pred_check_branch
      %34 = sbr.rel (0) target = $region9
    $region8: #{tpu_custom_call.1} parent=1 // pred_region
      %36 = vsyncadd [#allocation6], 0
      %s37 = sshll.u32 %s1, 4
      %s38 = int_to_ptr.hbm [resolvable:$true] %s37
      %s39 = sshll.u32 [#allocation5], 4
      %s40 = int_to_ptr.vmem [resolvable:$true] %s39
      %45 = dma.hbm_to_vmem [thread:$0]  %s38, 512, %s40, [#allocation6], 64, 64, 4
    $region9: #{tpu_custom_call.1} parent=1 // pred_fallthru
      _
    // Predicated region
    $region10: #{tpu_custom_call.1} parent=1 // pred_check
      _
    $region11: #{tpu_custom_call.1} parent=1 // pred_check_branch
      %47 = sbr.rel (0) target = $region13
    $region12: #{tpu_custom_call.1} parent=1 // pred_region
      _
    $region13: #{tpu_custom_call.1} parent=1 // pred_fallthru
      _
    // Predicated region
    $region14: #{tpu_custom_call.1} parent=1 // pred_check
      _
    $region15: #{tpu_custom_call.1} parent=1 // pred_check_branch
      %49 = sbr.rel (0) target = $region17
    $region16: #{tpu_custom_call.1} parent=1 // pred_region
      %51 = vsyncadd [#allocation6], 0
      %s53 = sshll.u32 %s3, 4
      %s54 = int_to_ptr.hbm [resolvable:$true] %s53
      %s55 = sshll.u32 [#allocation7], 4
      %s56 = int_to_ptr.vmem [resolvable:$true] %s55
      %58 = dma.hbm_to_vmem [thread:$0]  %s54, 16, %s56, [#allocation6]
    $region17: #{tpu_custom_call.1} parent=1 // pred_fallthru
      _
    // Predicated region
    $region18: #{tpu_custom_call.1} parent=1 // pred_check
      _
    $region19: #{tpu_custom_call.1} parent=1 // pred_check_branch
      %60 = sbr.rel (0) target = $region21
    $region20: #{tpu_custom_call.1} parent=1 // pred_region
      %62 = vsyncadd [#allocation9], 0
      %s64 = sshll.u32 %s4, 4
      %s65 = int_to_ptr.hbm [resolvable:$true] %s64
      %s66 = sshll.u32 [#allocation8], 4
      %s67 = int_to_ptr.vmem [resolvable:$true] %s66
      %69 = dma.hbm_to_vmem [thread:$0]  %s65, 16, %s67, [#allocation9]
    $region21: #{tpu_custom_call.1} parent=1 // pred_fallthru
      _
    // Predicated region
    $region22: #{tpu_custom_call.1} parent=1 // pred_check
      _
    $region23: #{tpu_custom_call.1} parent=1 // pred_check_branch
      %71 = sbr.rel (0) target = $region25
    $region24: #{tpu_custom_call.1} parent=1 // pred_region
      %73 = vsyncadd [#allocation9], 0
      %s74 = sshll.u32 %s5, 4
      %s75 = int_to_ptr.hbm [resolvable:$true] %s74
      %s76 = sshll.u32 [#allocation10], 4
      %s77 = int_to_ptr.vmem [resolvable:$true] %s76
      %82 = dma.hbm_to_vmem [thread:$0]  %s75, 2048, %s77, [#allocation9], 128, 128, 8
    $region25: #{tpu_custom_call.1} parent=1 // pred_fallthru
      _
    // Predicated region
    $region26: #{tpu_custom_call.1} parent=1 // pred_check
      _
    $region27: #{tpu_custom_call.1} parent=1 // pred_check_branch
      %84 = sbr.rel (0) target = $region29
    $region28: #{tpu_custom_call.1} parent=1 // pred_region
      _
    $region29: #{tpu_custom_call.1} parent=1 // pred_fallthru
      _
    // Predicated region
    $region30: #{tpu_custom_call.1} parent=1 // pred_check
      _
    $region31: #{tpu_custom_call.1} parent=1 // pred_check_branch
      %86 = sbr.rel (0) target = $region33
    $region32: #{tpu_custom_call.1} parent=1 // pred_region
      %88 = vsyncadd [#allocation12], 0
      %s90 = sshll.u32 %s7, 4
      %s91 = int_to_ptr.hbm [resolvable:$true] %s90
      %s92 = sshll.u32 [#allocation11], 4
      %s93 = int_to_ptr.vmem [resolvable:$true] %s92
      %95 = dma.hbm_to_vmem [thread:$0]  %s91, 32, %s93, [#allocation12]
    $region33: #{tpu_custom_call.1} parent=1 // pred_fallthru
      _
    // Predicated region
    $region34: #{tpu_custom_call.1} parent=1 // pred_check
      _
    $region35: #{tpu_custom_call.1} parent=1 // pred_check_branch
      %97 = sbr.rel (0) target = $region37
    $region36: #{tpu_custom_call.1} parent=1 // pred_region
      %99 = vsyncadd [#allocation12], 0
      %s101 = sshll.u32 %s8, 4
      %s102 = int_to_ptr.hbm [resolvable:$true] %s101
      %s103 = sshll.u32 [#allocation13], 4
      %s104 = int_to_ptr.vmem [resolvable:$true] %s103
      %106 = dma.hbm_to_vmem [thread:$0]  %s102, 32, %s104, [#allocation12]
    $region37: #{tpu_custom_call.1} parent=1 // pred_fallthru
      _
    // Predicated region
    $region38: #{tpu_custom_call.1} parent=1 // pred_check
      _
    $region39: #{tpu_custom_call.1} parent=1 // pred_check_branch
      %108 = sbr.rel (0) target = $region41
    $region40: #{tpu_custom_call.1} parent=1 // pred_region
      %110 = vsyncadd [#allocation15], 0
      %s111 = sshll.u32 %s9, 4
      %s112 = int_to_ptr.hbm [resolvable:$true] %s111
      %s113 = sshll.u32 [#allocation14], 4
      %s114 = int_to_ptr.vmem [resolvable:$true] %s113
      %119 = dma.hbm_to_vmem [thread:$0]  %s112, 8192, %s114, [#allocation15], 256, 256, 16
    $region41: #{tpu_custom_call.1} parent=1 // pred_fallthru
      _
    // Predicated region
    $region42: #{tpu_custom_call.1} parent=1 // pred_check
      _
    $region43: #{tpu_custom_call.1} parent=1 // pred_check_branch
      %121 = sbr.rel (0) target = $region45
    $region44: #{tpu_custom_call.1} parent=1 // pred_region
      _
    $region45: #{tpu_custom_call.1} parent=1 // pred_fallthru
      _
    // Predicated region
    $region46: #{tpu_custom_call.1} parent=1 // pred_check
      _
    $region47: #{tpu_custom_call.1} parent=1 // pred_check_branch
      %123 = sbr.rel (0) target = $region49
    $region48: #{tpu_custom_call.1} parent=1 // pred_region
      %125 = dma.done [#allocation3], 64
    $region49: #{tpu_custom_call.1} parent=1 // pred_fallthru
      _
    // Predicated region
    $region50: #{tpu_custom_call.1} parent=1 // pred_check
      _
    $region51: #{tpu_custom_call.1} parent=1 // pred_check_branch
      %127 = sbr.rel (0) target = $region53
    $region52: #{tpu_custom_call.1} parent=1 // pred_region
      %129 = dma.done [#allocation6], 512
    $region53: #{tpu_custom_call.1} parent=1 // pred_fallthru
      _
    // Predicated region
    $region54: #{tpu_custom_call.1} parent=1 // pred_check
      _
    $region55: #{tpu_custom_call.1} parent=1 // pred_check_branch
      %131 = sbr.rel (0) target = $region57
    $region56: #{tpu_custom_call.1} parent=1 // pred_region
      %133 = dma.done [#allocation6], 16
    $region57: #{tpu_custom_call.1} parent=1 // pred_fallthru
      _
    // Predicated region
    $region58: #{tpu_custom_call.1} parent=1 // pred_check
      _
    $region59: #{tpu_custom_call.1} parent=1 // pred_check_branch
      %135 = sbr.rel (0) target = $region61
    $region60: #{tpu_custom_call.1} parent=1 // pred_region
      %137 = dma.done [#allocation9], 16
    $region61: #{tpu_custom_call.1} parent=1 // pred_fallthru
      _
    // Predicated region
    $region62: #{tpu_custom_call.1} parent=1 // pred_check
      _
    $region63: #{tpu_custom_call.1} parent=1 // pred_check_branch
      %139 = sbr.rel (0) target = $region65
    $region64: #{tpu_custom_call.1} parent=1 // pred_region
      %141 = dma.done [#allocation9], 2048
    $region65: #{tpu_custom_call.1} parent=1 // pred_fallthru
      _
    // Predicated region
    $region66: #{tpu_custom_call.1} parent=1 // pred_check
      _
    $region67: #{tpu_custom_call.1} parent=1 // pred_check_branch
      %143 = sbr.rel (0) target = $region69
    $region68: #{tpu_custom_call.1} parent=1 // pred_region
      %145 = dma.done [#allocation12], 32
    $region69: #{tpu_custom_call.1} parent=1 // pred_fallthru
      _
    // Predicated region
    $region70: #{tpu_custom_call.1} parent=1 // pred_check
      _
    $region71: #{tpu_custom_call.1} parent=1 // pred_check_branch
      %147 = sbr.rel (0) target = $region73
    $region72: #{tpu_custom_call.1} parent=1 // pred_region
      %149 = dma.done [#allocation12], 32
    $region73: #{tpu_custom_call.1} parent=1 // pred_fallthru
      _
    // Predicated region
    $region74: #{tpu_custom_call.1} parent=1 // pred_check
      _
    $region75: #{tpu_custom_call.1} parent=1 // pred_check_branch
      %151 = sbr.rel (0) target = $region77
    $region76: #{tpu_custom_call.1} parent=1 // pred_region
      %153 = dma.done [#allocation15], 8192
    $region77: #{tpu_custom_call.1} parent=1 // pred_fallthru
      _
    %v155 = vld [vmem:[#allocation2] sm:$0xf]
    %v156 = vld [vmem:[#allocation5] sm:$0xf]
    %v157 = vld [vmem:[#allocation5 + $0x4] sm:$0xf]
    %v158 = vld [vmem:[#allocation5 + $0x8] sm:$0xf]
    %v159 = vld [vmem:[#allocation5 + $0xc] sm:$0xf]
    %v160 = vld [vmem:[#allocation5 + $0x10] sm:$0xf]
    %v161 = vld [vmem:[#allocation5 + $0x14] sm:$0xf]
    %v162 = vld [vmem:[#allocation5 + $0x18] sm:$0xf]
    %v163 = vld [vmem:[#allocation5 + $0x1c] sm:$0xf]
    %v164 = vld [vmem:[%s2] sm:$0x1]
    %v166 = vperm.slane %v164, 0
    %v176 = vunpack.c.l.b16 %v156
    %v177 = vunpack.c.l.b16 %v157
    %v178 = vunpack.c.l.b16 %v158
    %v179 = vunpack.c.l.b16 %v159
    %v180 = vunpack.c.l.b16 %v160
    %v181 = vunpack.c.l.b16 %v161
    %v182 = vunpack.c.l.b16 %v162
    %v183 = vunpack.c.l.b16 %v163
    %v184 = vpack.c.b16 %v177, %v176
    %v185 = vpack.c.b16 %v179, %v178
    %v186 = vpack.c.b16 %v181, %v180
    %v187 = vpack.c.b16 %v183, %v182
    %vm192 = vcmask 523264
    %v194 = vsel %vm192, %v155, 0
    %196 = vmatpush.bf16.msra.mxu0 0
    %197 = vmatpush.bf16.msra.mxu0 0
    %198 = vmatpush.bf16.msra.mxu0 0
    %199 = vmatpush.bf16.msra.mxu0 0
    %200 = vmatpush.bf16.msra.mxu0 %v187
    %201 = vmatpush.bf16.msra.mxu0 %v186
    %202 = vmatpush.bf16.msra.mxu0 %v185
    %203 = vmatpush.bf16.msra.mxu0 %v184
    %204 = vmatmul.bf16.gmra.mxu0 %v194
    %v205 = vpop.f32.mrf.mxu0
    %v206 = vadd.f32 %v166, %v205
    %v207 = vpop.f32.mrf.mxu0
    %208 = vdwg.mxu0
    %v209 = vsub.f32 0.0, %v206
    %v210 = vmul.f32 %v209, 1.442695
    %v211 = vpow.pop %v210
    %v212 = vadd.f32 %v211, 1.0
    %v213 = vrcp.pop %v212
    %v214 = vmul.f32 %v206, %v213
    %v215 = vld [vmem:[#allocation7] sm:$0x1]
    %v216 = vld [vmem:[#allocation8] sm:$0x1]
    %v217 = vrot.slane %v214, 4
    %v218 = vadd.f32 %v214, %v217
    %v219 = vrot.slane %v218, 2
    %v220 = vadd.f32 %v218, %v219
    %v221 = vrot.slane %v220, 1
    %v222 = vadd.f32 %v220, %v221
    %v223 = vmul.f32 %v214, %v214
    %v224 = vrot.slane %v223, 4
    %v225 = vadd.f32 %v223, %v224
    %v226 = vrot.slane %v225, 2
    %v227 = vadd.f32 %v225, %v226
    %v228 = vrot.slane %v227, 1
    %v229 = vadd.f32 %v227, %v228
    %v230 = vmul.f32 %v222, 0.125
    %v231 = vmul.f32 %v229, 0.125
    %v232 = vmul.f32 %v230, %v230
    %v233 = vsub.f32 %v231, %v232
    %v234 = vmax.f32 %v233, 0.0
    %v235 = vadd.f32 %v234, 1e-05
    %v236 = vrsqrt.pop %v235
    %v237 = vmul.f32 %v236, %v235
    %v238 = vmul.f32 %v237, %v236
    %v239 = vmul.f32 0.5, %v238
    %v240 = vsub.f32 1.5, %v239
    %v241 = vmul.f32 %v236, %v240
    %vm242 = vweird.f32 %v235
    %vm243 = vweird.f32 %v236
    %vm244 = vmor %vm242, %vm243
    %v245 = vsel %vm244, %v236, %v241
    %v246 = vmul.f32 %v215, %v245
    %v247 = vmul.f32 %v230, %v246
    %v248 = vsub.f32 %v216, %v247
    %v250 = vperm.slane %v246, 0
    %v252 = vmul.f32 %v214, %v250
    %v254 = vperm.slane %v248, 0
    %v256 = vadd.f32 %v252, %v254
    %v257 = vpack.c.bf16 %v256, %v256
    %v258 = vld [vmem:[#allocation10] sm:$0xff]
    %v259 = vld [vmem:[#allocation10 + $0x8] sm:$0xff]
    %v260 = vld [vmem:[#allocation10 + $0x10] sm:$0xff]
    %v261 = vld [vmem:[#allocation10 + $0x18] sm:$0xff]
    %v262 = vld [vmem:[#allocation10 + $0x20] sm:$0xff]
    %v263 = vld [vmem:[#allocation10 + $0x28] sm:$0xff]
    %v264 = vld [vmem:[#allocation10 + $0x30] sm:$0xff]
    %v265 = vld [vmem:[#allocation10 + $0x38] sm:$0xff]
    %v266 = vld [vmem:[#allocation10 + $0x40] sm:$0xff]
    %v267 = vld [vmem:[#allocation10 + $0x48] sm:$0xff]
    %v268 = vld [vmem:[#allocation10 + $0x50] sm:$0xff]
    %v269 = vld [vmem:[#allocation10 + $0x58] sm:$0xff]
    %v270 = vld [vmem:[#allocation10 + $0x60] sm:$0xff]
    %v271 = vld [vmem:[#allocation10 + $0x68] sm:$0xff]
    %v272 = vld [vmem:[#allocation10 + $0x70] sm:$0xff]
    %v273 = vld [vmem:[#allocation10 + $0x78] sm:$0xff]
    %v274 = vld [vmem:[%s6] sm:$0x3]
    %v276 = vperm.slane %v274, 0
    %v277 = vperm.slane %v274, 1
    %v296 = vunpack.c.l.b16 %v258
    %v297 = vunpack.c.h.b16 %v258
    %v298 = vunpack.c.l.b16 %v259
    %v299 = vunpack.c.h.b16 %v259
    %v300 = vunpack.c.l.b16 %v260
    %v301 = vunpack.c.h.b16 %v260
    %v302 = vunpack.c.l.b16 %v261
    %v303 = vunpack.c.h.b16 %v261
    %v304 = vunpack.c.l.b16 %v262
    %v305 = vunpack.c.h.b16 %v262
    %v306 = vunpack.c.l.b16 %v263
    %v307 = vunpack.c.h.b16 %v263
    %v308 = vunpack.c.l.b16 %v264
    %v309 = vunpack.c.h.b16 %v264
    %v310 = vunpack.c.l.b16 %v265
    %v311 = vunpack.c.h.b16 %v265
    %v312 = vunpack.c.l.b16 %v266
    %v313 = vunpack.c.h.b16 %v266
    %v314 = vunpack.c.l.b16 %v267
    %v315 = vunpack.c.h.b16 %v267
    %v316 = vunpack.c.l.b16 %v268
    %v317 = vunpack.c.h.b16 %v268
    %v318 = vunpack.c.l.b16 %v269
    %v319 = vunpack.c.h.b16 %v269
    %v320 = vunpack.c.l.b16 %v270
    %v321 = vunpack.c.h.b16 %v270
    %v322 = vunpack.c.l.b16 %v271
    %v323 = vunpack.c.h.b16 %v271
    %v324 = vunpack.c.l.b16 %v272
    %v325 = vunpack.c.h.b16 %v272
    %v326 = vunpack.c.l.b16 %v273
    %v327 = vunpack.c.h.b16 %v273
    %v328 = vpack.c.b16 %v298, %v296
    %v329 = vpack.c.b16 %v299, %v297
    %v330 = vpack.c.b16 %v302, %v300
    %v331 = vpack.c.b16 %v303, %v301
    %v332 = vpack.c.b16 %v306, %v304
    %v333 = vpack.c.b16 %v307, %v305
    %v334 = vpack.c.b16 %v310, %v308
    %v335 = vpack.c.b16 %v311, %v309
    %v336 = vpack.c.b16 %v314, %v312
    %v337 = vpack.c.b16 %v315, %v313
    %v338 = vpack.c.b16 %v318, %v316
    %v339 = vpack.c.b16 %v319, %v317
    %v340 = vpack.c.b16 %v322, %v320
    %v341 = vpack.c.b16 %v323, %v321
    %v342 = vpack.c.b16 %v326, %v324
    %v343 = vpack.c.b16 %v327, %v325
    %360 = vmatpush.bf16.msra.mxu0 %v342
    %361 = vmatpush.bf16.msra.mxu0 %v340
    %362 = vmatpush.bf16.msra.mxu0 %v338
    %363 = vmatpush.bf16.msra.mxu0 %v336
    %364 = vmatpush.bf16.msra.mxu0 %v334
    %365 = vmatpush.bf16.msra.mxu0 %v332
    %366 = vmatpush.bf16.msra.mxu0 %v330
    %367 = vmatpush.bf16.msra.mxu0 %v328
    %368 = vmatmul.bf16.gmra.mxu0 %v257
    %v369 = vpop.f32.mrf.mxu0
    %v370 = vadd.f32 %v276, %v369
    %v371 = vpop.f32.mrf.mxu0
    %372 = vdwg.mxu0
    %373 = vmatpush.bf16.msra.mxu0 %v343
    %374 = vmatpush.bf16.msra.mxu0 %v341
    %375 = vmatpush.bf16.msra.mxu0 %v339
    %376 = vmatpush.bf16.msra.mxu0 %v337
    %377 = vmatpush.bf16.msra.mxu0 %v335
    %378 = vmatpush.bf16.msra.mxu0 %v333
    %379 = vmatpush.bf16.msra.mxu0 %v331
    %380 = vmatpush.bf16.msra.mxu0 %v329
    %381 = vmatmul.bf16.gmra.mxu0 %v257
    %v382 = vpop.f32.mrf.mxu0
    %v383 = vadd.f32 %v277, %v382
    %v384 = vpop.f32.mrf.mxu0
    %385 = vdwg.mxu0
    %v386 = vsub.f32 0.0, %v370
    %v387 = vsub.f32 0.0, %v383
    %v388 = vmul.f32 %v386, 1.442695
    %v389 = vpow.pop %v388
    %v390 = vmul.f32 %v387, 1.442695
    %v391 = vpow.pop %v390
    %v392 = vadd.f32 %v389, 1.0
    %v393 = vadd.f32 %v391, 1.0
    %v394 = vrcp.pop %v392
    %v395 = vrcp.pop %v393
    %v396 = vmul.f32 %v370, %v394
    %v397 = vmul.f32 %v383, %v395
    %v398 = vld [vmem:[#allocation11] sm:$0x3]
    %v399 = vld [vmem:[#allocation13] sm:$0x3]
    %v400 = vrot.slane %v396, 4
    %v401 = vadd.f32 %v396, %v400
    %v402 = vrot.slane %v401, 2
    %v403 = vadd.f32 %v401, %v402
    %v404 = vrot.slane %v403, 1
    %v405 = vadd.f32 %v403, %v404
    %v406 = vrot.slane %v397, 4
    %v407 = vadd.f32 %v397, %v406
    %v408 = vrot.slane %v407, 2
    %v409 = vadd.f32 %v407, %v408
    %v410 = vrot.slane %v409, 1
    %v411 = vadd.f32 %v409, %v410
    %v412 = vmul.f32 %v396, %v396
    %v413 = vmul.f32 %v397, %v397
    %v414 = vrot.slane %v412, 4
    %v415 = vadd.f32 %v412, %v414
    %v416 = vrot.slane %v415, 2
    %v417 = vadd.f32 %v415, %v416
    %v418 = vrot.slane %v417, 1
    %v419 = vadd.f32 %v417, %v418
    %v420 = vrot.slane %v413, 4
    %v421 = vadd.f32 %v413, %v420
    %v422 = vrot.slane %v421, 2
    %v423 = vadd.f32 %v421, %v422
    %v424 = vrot.slane %v423, 1
    %v425 = vadd.f32 %v423, %v424
    %v426 = vmul.f32 %v405, 0.125
    %v427 = vmul.f32 %v411, 0.125
    %v428 = vmul.f32 %v419, 0.125
    %v429 = vmul.f32 %v425, 0.125
    %v430 = vmul.f32 %v426, %v426
    %v431 = vmul.f32 %v427, %v427
    %v432 = vsub.f32 %v428, %v430
    %v433 = vsub.f32 %v429, %v431
    %v434 = vmax.f32 %v432, 0.0
    %v435 = vmax.f32 %v433, 0.0
    %v436 = vadd.f32 %v434, 1e-05
    %v437 = vadd.f32 %v435, 1e-05
    %v438 = vrsqrt.pop %v436
    %v439 = vmul.f32 %v438, %v436
    %v440 = vmul.f32 %v439, %v438
    %v441 = vmul.f32 0.5, %v440
    %v442 = vsub.f32 1.5, %v441
    %v443 = vmul.f32 %v438, %v442
    %vm444 = vweird.f32 %v436
    %vm445 = vweird.f32 %v438
    %vm446 = vmor %vm444, %vm445
    %v447 = vsel %vm446, %v438, %v443
    %v448 = vrsqrt.pop %v437
    %v449 = vmul.f32 %v448, %v437
    %v450 = vmul.f32 %v449, %v448
    %v451 = vmul.f32 0.5, %v450
    %v452 = vsub.f32 1.5, %v451
    %v453 = vmul.f32 %v448, %v452
    %vm454 = vweird.f32 %v437
    %vm455 = vweird.f32 %v448
    %vm456 = vmor %vm454, %vm455
    %v457 = vsel %vm456, %v448, %v453
    %v460 = vrot.slane %v457, 7
    %vm461 = vcmask 1040384
    %v462 = vsel %vm461, %v447, %v460
    %v464 = vmul.f32 %v398, %v462
    %v466 = vperm.slane %v464, 0
    %v467 = vperm.slane %v464, 1
    %v470 = vmul.f32 %v426, %v466
    %v471 = vmul.f32 %v427, %v467
    %v474 = vrot.slane %v471, 7
    %v475 = vsel %vm461, %v470, %v474
    %v477 = vsub.f32 %v399, %v475
    %v478 = vmul.f32 %v396, %v466
    %v479 = vmul.f32 %v397, %v467
    %v481 = vperm.slane %v477, 0
    %v482 = vperm.slane %v477, 1
    %v485 = vadd.f32 %v478, %v481
    %v486 = vadd.f32 %v479, %v482
    %v487 = vpack.c.bf16 %v485, %v485
    %v488 = vpack.c.bf16 %v486, %v486
    %v489 = vld [vmem:[#allocation14] sm:$0xff]
    %v490 = vld [vmem:[#allocation14 + $0x8] sm:$0xff]
    %v491 = vld [vmem:[#allocation14 + $0x10] sm:$0xff]
    %v492 = vld [vmem:[#allocation14 + $0x18] sm:$0xff]
    %v493 = vld [vmem:[#allocation14 + $0x20] sm:$0xff]
    %v494 = vld [vmem:[#allocation14 + $0x28] sm:$0xff]
    %v495 = vld [vmem:[#allocation14 + $0x30] sm:$0xff]
    %v496 = vld [vmem:[#allocation14 + $0x38] sm:$0xff]
    %v497 = vld [vmem:[#allocation14 + $0x40] sm:$0xff]
    %v498 = vld [vmem:[#allocation14 + $0x48] sm:$0xff]
    %v499 = vld [vmem:[#allocation14 + $0x50] sm:$0xff]
    %v500 = vld [vmem:[#allocation14 + $0x58] sm:$0xff]
    %v501 = vld [vmem:[#allocation14 + $0x60] sm:$0xff]
    %v502 = vld [vmem:[#allocation14 + $0x68] sm:$0xff]
    %v503 = vld [vmem:[#allocation14 + $0x70] sm:$0xff]
    %v504 = vld [vmem:[#allocation14 + $0x78] sm:$0xff]
    %v505 = vld [vmem:[#allocation14 + $0x80] sm:$0xff]
    %v506 = vld [vmem:[#allocation14 + $0x88] sm:$0xff]
    %v507 = vld [vmem:[#allocation14 + $0x90] sm:$0xff]
    %v508 = vld [vmem:[#allocation14 + $0x98] sm:$0xff]
    %v509 = vld [vmem:[#allocation14 + $0xa0] sm:$0xff]
    %v510 = vld [vmem:[#allocation14 + $0xa8] sm:$0xff]
    %v511 = vld [vmem:[#allocation14 + $0xb0] sm:$0xff]
    %v512 = vld [vmem:[#allocation14 + $0xb8] sm:$0xff]
    %v513 = vld [vmem:[#allocation14 + $0xc0] sm:$0xff]
    %v514 = vld [vmem:[#allocation14 + $0xc8] sm:$0xff]
    %v515 = vld [vmem:[#allocation14 + $0xd0] sm:$0xff]
    %v516 = vld [vmem:[#allocation14 + $0xd8] sm:$0xff]
    %v517 = vld [vmem:[#allocation14 + $0xe0] sm:$0xff]
    %v518 = vld [vmem:[#allocation14 + $0xe8] sm:$0xff]
    %v519 = vld [vmem:[#allocation14 + $0xf0] sm:$0xff]
    %v520 = vld [vmem:[#allocation14 + $0xf8] sm:$0xff]
    %v521 = vld [vmem:[#allocation14 + $0x100] sm:$0xff]
    %v522 = vld [vmem:[#allocation14 + $0x108] sm:$0xff]
    %v523 = vld [vmem:[#allocation14 + $0x110] sm:$0xff]
    %v524 = vld [vmem:[#allocation14 + $0x118] sm:$0xff]
    %v525 = vld [vmem:[#allocation14 + $0x120] sm:$0xff]
    %v526 = vld [vmem:[#allocation14 + $0x128] sm:$0xff]
    %v527 = vld [vmem:[#allocation14 + $0x130] sm:$0xff]
    %v528 = vld [vmem:[#allocation14 + $0x138] sm:$0xff]
    %v529 = vld [vmem:[#allocation14 + $0x140] sm:$0xff]
    %v530 = vld [vmem:[#allocation14 + $0x148] sm:$0xff]
    %v531 = vld [vmem:[#allocation14 + $0x150] sm:$0xff]
    %v532 = vld [vmem:[#allocation14 + $0x158] sm:$0xff]
    %v533 = vld [vmem:[#allocation14 + $0x160] sm:$0xff]
    %v534 = vld [vmem:[#allocation14 + $0x168] sm:$0xff]
    %v535 = vld [vmem:[#allocation14 + $0x170] sm:$0xff]
    %v536 = vld [vmem:[#allocation14 + $0x178] sm:$0xff]
    %v537 = vld [vmem:[#allocation14 + $0x180] sm:$0xff]
    %v538 = vld [vmem:[#allocation14 + $0x188] sm:$0xff]
    %v539 = vld [vmem:[#allocation14 + $0x190] sm:$0xff]
    %v540 = vld [vmem:[#allocation14 + $0x198] sm:$0xff]
    %v541 = vld [vmem:[#allocation14 + $0x1a0] sm:$0xff]
    %v542 = vld [vmem:[#allocation14 + $0x1a8] sm:$0xff]
    %v543 = vld [vmem:[#allocation14 + $0x1b0] sm:$0xff]
    %v544 = vld [vmem:[#allocation14 + $0x1b8] sm:$0xff]
    %v545 = vld [vmem:[#allocation14 + $0x1c0] sm:$0xff]
    %v546 = vld [vmem:[#allocation14 + $0x1c8] sm:$0xff]
    %v547 = vld [vmem:[#allocation14 + $0x1d0] sm:$0xff]
    %v548 = vld [vmem:[#allocation14 + $0x1d8] sm:$0xff]
    %v549 = vld [vmem:[#allocation14 + $0x1e0] sm:$0xff]
    %v550 = vld [vmem:[#allocation14 + $0x1e8] sm:$0xff]
    %v551 = vld [vmem:[#allocation14 + $0x1f0] sm:$0xff]
    %v552 = vld [vmem:[#allocation14 + $0x1f8] sm:$0xff]
    %v553 = vld [vmem:[%s10] sm:$0xf]
    %v555 = vperm.slane %v553, 0
    %v556 = vperm.slane %v553, 1
    %v557 = vperm.slane %v553, 2
    %v558 = vperm.slane %v553, 3
    %v627 = vunpack.c.l.b16 %v489
    %v628 = vunpack.c.h.b16 %v489
    %v629 = vunpack.c.l.b16 %v490
    %v630 = vunpack.c.h.b16 %v490
    %v631 = vunpack.c.l.b16 %v491
    %v632 = vunpack.c.h.b16 %v491
    %v633 = vunpack.c.l.b16 %v492
    %v634 = vunpack.c.h.b16 %v492
    %v635 = vunpack.c.l.b16 %v493
    %v636 = vunpack.c.h.b16 %v493
    %v637 = vunpack.c.l.b16 %v494
    %v638 = vunpack.c.h.b16 %v494
    %v639 = vunpack.c.l.b16 %v495
    %v640 = vunpack.c.h.b16 %v495
    %v641 = vunpack.c.l.b16 %v496
    %v642 = vunpack.c.h.b16 %v496
    %v643 = vunpack.c.l.b16 %v497
    %v644 = vunpack.c.h.b16 %v497
    %v645 = vunpack.c.l.b16 %v498
    %v646 = vunpack.c.h.b16 %v498
    %v647 = vunpack.c.l.b16 %v499
    %v648 = vunpack.c.h.b16 %v499
    %v649 = vunpack.c.l.b16 %v500
    %v650 = vunpack.c.h.b16 %v500
    %v651 = vunpack.c.l.b16 %v501
    %v652 = vunpack.c.h.b16 %v501
    %v653 = vunpack.c.l.b16 %v502
    %v654 = vunpack.c.h.b16 %v502
    %v655 = vunpack.c.l.b16 %v503
    %v656 = vunpack.c.h.b16 %v503
    %v657 = vunpack.c.l.b16 %v504
    %v658 = vunpack.c.h.b16 %v504
    %v659 = vunpack.c.l.b16 %v505
    %v660 = vunpack.c.h.b16 %v505
    %v661 = vunpack.c.l.b16 %v506
    %v662 = vunpack.c.h.b16 %v506
    %v663 = vunpack.c.l.b16 %v507
    %v664 = vunpack.c.h.b16 %v507
    %v665 = vunpack.c.l.b16 %v508
    %v666 = vunpack.c.h.b16 %v508
    %v667 = vunpack.c.l.b16 %v509
    %v668 = vunpack.c.h.b16 %v509
    %v669 = vunpack.c.l.b16 %v510
    %v670 = vunpack.c.h.b16 %v510
    %v671 = vunpack.c.l.b16 %v511
    %v672 = vunpack.c.h.b16 %v511
    %v673 = vunpack.c.l.b16 %v512
    %v674 = vunpack.c.h.b16 %v512
    %v675 = vunpack.c.l.b16 %v513
    %v676 = vunpack.c.h.b16 %v513
    %v677 = vunpack.c.l.b16 %v514
    %v678 = vunpack.c.h.b16 %v514
    %v679 = vunpack.c.l.b16 %v515
    %v680 = vunpack.c.h.b16 %v515
    %v681 = vunpack.c.l.b16 %v516
    %v682 = vunpack.c.h.b16 %v516
    %v683 = vunpack.c.l.b16 %v517
    %v684 = vunpack.c.h.b16 %v517
    %v685 = vunpack.c.l.b16 %v518
    %v686 = vunpack.c.h.b16 %v518
    %v687 = vunpack.c.l.b16 %v519
    %v688 = vunpack.c.h.b16 %v519
    %v689 = vunpack.c.l.b16 %v520
    %v690 = vunpack.c.h.b16 %v520
    %v691 = vunpack.c.l.b16 %v521
    %v692 = vunpack.c.h.b16 %v521
    %v693 = vunpack.c.l.b16 %v522
    %v694 = vunpack.c.h.b16 %v522
    %v695 = vunpack.c.l.b16 %v523
    %v696 = vunpack.c.h.b16 %v523
    %v697 = vunpack.c.l.b16 %v524
    %v698 = vunpack.c.h.b16 %v524
    %v699 = vunpack.c.l.b16 %v525
    %v700 = vunpack.c.h.b16 %v525
    %v701 = vunpack.c.l.b16 %v526
    %v702 = vunpack.c.h.b16 %v526
    %v703 = vunpack.c.l.b16 %v527
    %v704 = vunpack.c.h.b16 %v527
    %v705 = vunpack.c.l.b16 %v528
    %v706 = vunpack.c.h.b16 %v528
    %v707 = vunpack.c.l.b16 %v529
    %v708 = vunpack.c.h.b16 %v529
    %v709 = vunpack.c.l.b16 %v530
    %v710 = vunpack.c.h.b16 %v530
    %v711 = vunpack.c.l.b16 %v531
    %v712 = vunpack.c.h.b16 %v531
    %v713 = vunpack.c.l.b16 %v532
    %v714 = vunpack.c.h.b16 %v532
    %v715 = vunpack.c.l.b16 %v533
    %v716 = vunpack.c.h.b16 %v533
    %v717 = vunpack.c.l.b16 %v534
    %v718 = vunpack.c.h.b16 %v534
    %v719 = vunpack.c.l.b16 %v535
    %v720 = vunpack.c.h.b16 %v535
    %v721 = vunpack.c.l.b16 %v536
    %v722 = vunpack.c.h.b16 %v536
    %v723 = vunpack.c.l.b16 %v537
    %v724 = vunpack.c.h.b16 %v537
    %v725 = vunpack.c.l.b16 %v538
    %v726 = vunpack.c.h.b16 %v538
    %v727 = vunpack.c.l.b16 %v539
    %v728 = vunpack.c.h.b16 %v539
    %v729 = vunpack.c.l.b16 %v540
    %v730 = vunpack.c.h.b16 %v540
    %v731 = vunpack.c.l.b16 %v541
    %v732 = vunpack.c.h.b16 %v541
    %v733 = vunpack.c.l.b16 %v542
    %v734 = vunpack.c.h.b16 %v542
    %v735 = vunpack.c.l.b16 %v543
    %v736 = vunpack.c.h.b16 %v543
    %v737 = vunpack.c.l.b16 %v544
    %v738 = vunpack.c.h.b16 %v544
    %v739 = vunpack.c.l.b16 %v545
    %v740 = vunpack.c.h.b16 %v545
    %v741 = vunpack.c.l.b16 %v546
    %v742 = vunpack.c.h.b16 %v546
    %v743 = vunpack.c.l.b16 %v547
    %v744 = vunpack.c.h.b16 %v547
    %v745 = vunpack.c.l.b16 %v548
    %v746 = vunpack.c.h.b16 %v548
    %v747 = vunpack.c.l.b16 %v549
    %v748 = vunpack.c.h.b16 %v549
    %v749 = vunpack.c.l.b16 %v550
    %v750 = vunpack.c.h.b16 %v550
    %v751 = vunpack.c.l.b16 %v551
    %v752 = vunpack.c.h.b16 %v551
    %v753 = vunpack.c.l.b16 %v552
    %v754 = vunpack.c.h.b16 %v552
    %v755 = vpack.c.b16 %v631, %v627
    %v756 = vpack.c.b16 %v632, %v628
    %v757 = vpack.c.b16 %v633, %v629
    %v758 = vpack.c.b16 %v634, %v630
    %v759 = vpack.c.b16 %v639, %v635
    %v760 = vpack.c.b16 %v640, %v636
    %v761 = vpack.c.b16 %v641, %v637
    %v762 = vpack.c.b16 %v642, %v638
    %v763 = vpack.c.b16 %v647, %v643
    %v764 = vpack.c.b16 %v648, %v644
    %v765 = vpack.c.b16 %v649, %v645
    %v766 = vpack.c.b16 %v650, %v646
    %v767 = vpack.c.b16 %v655, %v651
    %v768 = vpack.c.b16 %v656, %v652
    %v769 = vpack.c.b16 %v657, %v653
    %v770 = vpack.c.b16 %v658, %v654
    %v771 = vpack.c.b16 %v663, %v659
    %v772 = vpack.c.b16 %v664, %v660
    %v773 = vpack.c.b16 %v665, %v661
    %v774 = vpack.c.b16 %v666, %v662
    %v775 = vpack.c.b16 %v671, %v667
    %v776 = vpack.c.b16 %v672, %v668
    %v777 = vpack.c.b16 %v673, %v669
    %v778 = vpack.c.b16 %v674, %v670
    %v779 = vpack.c.b16 %v679, %v675
    %v780 = vpack.c.b16 %v680, %v676
    %v781 = vpack.c.b16 %v681, %v677
    %v782 = vpack.c.b16 %v682, %v678
    %v783 = vpack.c.b16 %v687, %v683
    %v784 = vpack.c.b16 %v688, %v684
    %v785 = vpack.c.b16 %v689, %v685
    %v786 = vpack.c.b16 %v690, %v686
    %v787 = vpack.c.b16 %v695, %v691
    %v788 = vpack.c.b16 %v696, %v692
    %v789 = vpack.c.b16 %v697, %v693
    %v790 = vpack.c.b16 %v698, %v694
    %v791 = vpack.c.b16 %v703, %v699
    %v792 = vpack.c.b16 %v704, %v700
    %v793 = vpack.c.b16 %v705, %v701
    %v794 = vpack.c.b16 %v706, %v702
    %v795 = vpack.c.b16 %v711, %v707
    %v796 = vpack.c.b16 %v712, %v708
    %v797 = vpack.c.b16 %v713, %v709
    %v798 = vpack.c.b16 %v714, %v710
    %v799 = vpack.c.b16 %v719, %v715
    %v800 = vpack.c.b16 %v720, %v716
    %v801 = vpack.c.b16 %v721, %v717
    %v802 = vpack.c.b16 %v722, %v718
    %v803 = vpack.c.b16 %v727, %v723
    %v804 = vpack.c.b16 %v728, %v724
    %v805 = vpack.c.b16 %v729, %v725
    %v806 = vpack.c.b16 %v730, %v726
    %v807 = vpack.c.b16 %v735, %v731
    %v808 = vpack.c.b16 %v736, %v732
    %v809 = vpack.c.b16 %v737, %v733
    %v810 = vpack.c.b16 %v738, %v734
    %v811 = vpack.c.b16 %v743, %v739
    %v812 = vpack.c.b16 %v744, %v740
    %v813 = vpack.c.b16 %v745, %v741
    %v814 = vpack.c.b16 %v746, %v742
    %v815 = vpack.c.b16 %v751, %v747
    %v816 = vpack.c.b16 %v752, %v748
    %v817 = vpack.c.b16 %v753, %v749
    %v818 = vpack.c.b16 %v754, %v750
    %883 = vmatpush.bf16.msra.mxu0 %v783
    %884 = vmatpush.bf16.msra.mxu0 %v779
    %885 = vmatpush.bf16.msra.mxu0 %v775
    %886 = vmatpush.bf16.msra.mxu0 %v771
    %887 = vmatpush.bf16.msra.mxu0 %v767
    %888 = vmatpush.bf16.msra.mxu0 %v763
    %889 = vmatpush.bf16.msra.mxu0 %v759
    %890 = vmatpush.bf16.msra.mxu0 %v755
    %891 = vmatmul.bf16.gmra.mxu0 %v487
    %v892 = vpop.f32.mrf.mxu0
    %v893 = vadd.f32 %v555, %v892
    %v894 = vpop.f32.mrf.mxu0
    %895 = vdwg.mxu0
    %896 = vmatpush.bf16.msra.mxu0 %v815
    %897 = vmatpush.bf16.msra.mxu0 %v811
    %898 = vmatpush.bf16.msra.mxu0 %v807
    %899 = vmatpush.bf16.msra.mxu0 %v803
    %900 = vmatpush.bf16.msra.mxu0 %v799
    %901 = vmatpush.bf16.msra.mxu0 %v795
    %902 = vmatpush.bf16.msra.mxu0 %v791
    %903 = vmatpush.bf16.msra.mxu0 %v787
    %904 = vmatmul.bf16.gmra.mxu0 %v488
    %v905 = vpop.f32.mrf.mxu0
    %v906 = vadd.f32 %v893, %v905
    %v907 = vpop.f32.mrf.mxu0
    %908 = vdwg.mxu0
    %909 = vmatpush.bf16.msra.mxu0 %v784
    %910 = vmatpush.bf16.msra.mxu0 %v780
    %911 = vmatpush.bf16.msra.mxu0 %v776
    %912 = vmatpush.bf16.msra.mxu0 %v772
    %913 = vmatpush.bf16.msra.mxu0 %v768
    %914 = vmatpush.bf16.msra.mxu0 %v764
    %915 = vmatpush.bf16.msra.mxu0 %v760
    %916 = vmatpush.bf16.msra.mxu0 %v756
    %917 = vmatmul.bf16.gmra.mxu0 %v487
    %v918 = vpop.f32.mrf.mxu0
    %v919 = vadd.f32 %v556, %v918
    %v920 = vpop.f32.mrf.mxu0
    %921 = vdwg.mxu0
    %922 = vmatpush.bf16.msra.mxu0 %v816
    %923 = vmatpush.bf16.msra.mxu0 %v812
    %924 = vmatpush.bf16.msra.mxu0 %v808
    %925 = vmatpush.bf16.msra.mxu0 %v804
    %926 = vmatpush.bf16.msra.mxu0 %v800
    %927 = vmatpush.bf16.msra.mxu0 %v796
    %928 = vmatpush.bf16.msra.mxu0 %v792
    %929 = vmatpush.bf16.msra.mxu0 %v788
    %930 = vmatmul.bf16.gmra.mxu0 %v488
    %v931 = vpop.f32.mrf.mxu0
    %v932 = vadd.f32 %v919, %v931
    %v933 = vpop.f32.mrf.mxu0
    %934 = vdwg.mxu0
    %935 = vmatpush.bf16.msra.mxu0 %v785
    %936 = vmatpush.bf16.msra.mxu0 %v781
    %937 = vmatpush.bf16.msra.mxu0 %v777
    %938 = vmatpush.bf16.msra.mxu0 %v773
    %939 = vmatpush.bf16.msra.mxu0 %v769
    %940 = vmatpush.bf16.msra.mxu0 %v765
    %941 = vmatpush.bf16.msra.mxu0 %v761
    %942 = vmatpush.bf16.msra.mxu0 %v757
    %943 = vmatmul.bf16.gmra.mxu0 %v487
    %v944 = vpop.f32.mrf.mxu0
    %v945 = vadd.f32 %v557, %v944
    %v946 = vpop.f32.mrf.mxu0
    %947 = vdwg.mxu0
    %948 = vmatpush.bf16.msra.mxu0 %v817
    %949 = vmatpush.bf16.msra.mxu0 %v813
    %950 = vmatpush.bf16.msra.mxu0 %v809
    %951 = vmatpush.bf16.msra.mxu0 %v805
    %952 = vmatpush.bf16.msra.mxu0 %v801
    %953 = vmatpush.bf16.msra.mxu0 %v797
    %954 = vmatpush.bf16.msra.mxu0 %v793
    %955 = vmatpush.bf16.msra.mxu0 %v789
    %956 = vmatmul.bf16.gmra.mxu0 %v488
    %v957 = vpop.f32.mrf.mxu0
    %v958 = vadd.f32 %v945, %v957
    %v959 = vpop.f32.mrf.mxu0
    %960 = vdwg.mxu0
    %961 = vmatpush.bf16.msra.mxu0 %v786
    %962 = vmatpush.bf16.msra.mxu0 %v782
    %963 = vmatpush.bf16.msra.mxu0 %v778
    %964 = vmatpush.bf16.msra.mxu0 %v774
    %965 = vmatpush.bf16.msra.mxu0 %v770
    %966 = vmatpush.bf16.msra.mxu0 %v766
    %967 = vmatpush.bf16.msra.mxu0 %v762
    %968 = vmatpush.bf16.msra.mxu0 %v758
    %969 = vmatmul.bf16.gmra.mxu0 %v487
    %v970 = vpop.f32.mrf.mxu0
    %v971 = vadd.f32 %v558, %v970
    %v972 = vpop.f32.mrf.mxu0
    %973 = vdwg.mxu0
    %974 = vmatpush.bf16.msra.mxu0 %v818
    %975 = vmatpush.bf16.msra.mxu0 %v814
    %976 = vmatpush.bf16.msra.mxu0 %v810
    %977 = vmatpush.bf16.msra.mxu0 %v806
    %978 = vmatpush.bf16.msra.mxu0 %v802
    %979 = vmatpush.bf16.msra.mxu0 %v798
    %980 = vmatpush.bf16.msra.mxu0 %v794
    %981 = vmatpush.bf16.msra.mxu0 %v790
    %982 = vmatmul.bf16.gmra.mxu0 %v488
    %v983 = vpop.f32.mrf.mxu0
    %v984 = vadd.f32 %v971, %v983
    %v985 = vpop.f32.mrf.mxu0
    %986 = vdwg.mxu0
    %987 = vst [vmem:[#allocation16] sm:$0xff] %v906
    %988 = vst [vmem:[#allocation16 + $0x8] sm:$0xff] %v932
    %989 = vst [vmem:[#allocation16 + $0x10] sm:$0xff] %v958
    %990 = vst [vmem:[#allocation16 + $0x18] sm:$0xff] %v984
    // Predicated region
    $region78: #{tpu_custom_call.1} parent=1 // pred_check
      _
    $region79: #{tpu_custom_call.1} parent=1 // pred_check_branch
      %992 = sbr.rel (0) target = $region81
    $region80: #{tpu_custom_call.1} parent=1 // pred_region
      %994 = vsyncadd [#allocation4], 0
      %s996 = sshll.u32 [#allocation16], 4
      %s997 = int_to_ptr.vmem [resolvable:$true] %s996
      %s998 = sshll.u32 %s11, 4
      %s999 = int_to_ptr.hbm [resolvable:$true] %s998
      %1001 = dma.vmem_to_hbm [thread:$0]  %s997, 512, %s999, [#allocation4]
    $region81: #{tpu_custom_call.1} parent=1 // pred_fallthru
      _
    // Predicated region
    $region82: #{tpu_custom_call.1} parent=1 // pred_check
      _
    $region83: #{tpu_custom_call.1} parent=1 // pred_check_branch
      %1003 = sbr.rel (0) target = $region85
    $region84: #{tpu_custom_call.1} parent=1 // pred_region
      %1005 = dma.done [#allocation4], 512
    $region85: #{tpu_custom_call.1} parent=1 // pred_fallthru
      _
    %1006 = vsyncpa [#allocation3], 1
    %1007 = vsyncpa [#allocation6], 1
    %1008 = vsyncpa [#allocation9], 1
    %1009 = vsyncpa [#allocation12], 1
    %1010 = vsyncpa [#allocation15], 1
    %1011 = vsyncpa [#allocation4], 1

</llo_original>
